<compile_context>
chip_gen: v7x
topology: tpu7x:2x2x1
jax: 0.10.0
libtpu: 0.0.40
codegen_flags: <defaults>
</compile_context>

<pallas_src>
import itertools
import operator
from functools import reduce

import jax
import jax.numpy as jnp
from jax.experimental import pallas as pl
from jax.experimental.pallas import tpu as pltpu


def _prod(xs):
    return reduce(operator.mul, xs, 1)


def _vmem_limits():
    """Device-aware (scoped-VMEM limit, per-step VMEM budget), in bytes."""
    phys = None
    try:
        info = pltpu.get_tpu_info()
        phys = getattr(info, "vmem_capacity_bytes", None)
    except Exception:
        phys = None
    if not phys:
        phys = 64 * 1024 * 1024  # conservative: v7x has 64 MiB per TensorCore
    limit = max(32 * 1024 * 1024, min(int(phys * 0.70), 96 * 1024 * 1024))
    budget = int(limit * 0.55)
    return limit, budget


def _pick_bt(B, fitting_divisors, steps_per_batch_step):
    """Largest batch tile that still leaves enough grid steps.

    Prefer >= 4 total steps (>= 2 per TensorCore on v7x megacore and enough for
    the BlockSpec pipeline to overlap DMA with the relayout), then >= 2, then
    simply the largest block that fits the budget.
    """
    for min_steps in (4, 2, 1):
        ok = [d for d in fitting_divisors
              if (B // d) * steps_per_batch_step >= min_steps]
        if ok:
            return max(ok)
    return max(fitting_divisors)


def _cost_estimate(bytes_accessed):
    try:
        return pl.CostEstimate(flops=0, transcendentals=0,
                               bytes_accessed=int(bytes_accessed))
    except Exception:
        return None


def permutation_forward(x, dim: int, *, _vmem_budget_override=None):
    """Pallas implementation of Permutation(dim).forward(x)."""
    if dim <= 1:
        return x

    nr_dims = x.ndim
    start_dim = nr_dims - 1 - dim
    assert start_dim > 0, "need at least one leading (batch) axis"

    lead = x.shape[:start_dim]
    obj = x.shape[start_dim:-1]
    C = x.shape[-1]
    d = len(obj)
    assert all(s == obj[0] for s in obj), (
        "Permutation requires equal extents on all permuted object axes "
        f"(got {obj}); the reference concatenation is ill-defined otherwise.")
    N = obj[0]

    # Collapse all leading axes into a single batch axis (free when there is
    # exactly one, as in the usual NLM layout).
    B = _prod(lead)
    xr = x.reshape((B,) + obj + (C,))
    rank = d + 2

    # Full-rank permutations on the collapsed layout, identity first — exactly
    # the slab order itertools.permutations produces in the PyTorch module.
    perms = [(0,) + tuple(1 + q for q in qp) + (rank - 1,)
             for qp in itertools.permutations(range(d))]
    m = len(perms)  # = dim!
    identity = tuple(range(rank))

    itemsize = jnp.dtype(x.dtype).itemsize
    per_batch = _prod(obj) * C * itemsize

    vmem_limit, budget = _vmem_limits()
    if _vmem_budget_override is not None:
        budget = int(_vmem_budget_override)

    lane_dense = (C % 128 == 0)
    out_factor = 1 if lane_dense else m

    def full_step_bytes(bt):  # double-buffered in + out, full object extent
        return 2 * bt * per_batch * (1 + out_factor)

    zeros_obj = (0,) * d
    out_shape_r = (B,) + obj + (m * C,)
    ideal_bytes = (1 + m) * xr.size * itemsize

    # TODO(synk): for bf16/int8 with C a multiple of 256/512, bitcast channel
    # pairs/quads to uint32 around the object-axis transpose to avoid packed
    # sublane interleave ops (biggest win on v5e).

    if full_step_bytes(1) <= budget:
        # ---------------- full-object-extent paths ----------------
        divisors = [v for v in range(1, B + 1) if B % v == 0]
        fitting = [v for v in divisors if full_step_bytes(v) <= budget]

        if lane_dense:
            Bt = _pick_bt(B, fitting, m)
            grid = (B // Bt, m)
            # Input block index is independent of k -> no re-DMA across the
            # innermost k axis on a core.
            in_spec = pl.BlockSpec((Bt,) + obj + (C,),
                                   lambda b, k: (b,) + zeros_obj + (0,))
            # k-th C-wide slab of the output (C % 128 == 0 -> unmasked stores).
            out_spec = pl.BlockSpec((Bt,) + obj + (C,),
                                    lambda b, k: (b,) + zeros_obj + (k,))

            def kernel(x_ref, o_ref):
                k = pl.program_id(1)
                for j, p in enumerate(perms):
                    @pl.when(k == j)
                    def _(p=p):
                        if p == identity:
                            # Straight VMEM copy, no vreg round-trip.
                            o_ref[...] = x_ref[...]
                        else:
                            # Read inside the branch: keeps vreg live ranges
                            # short (no full-block hoist above the when-chain).
                            o_ref[...] = jnp.transpose(x_ref[...], p)

            # Megacore split on the batch axis when possible (disjoint input
            # reads); keep k sequential so the input stays resident across it.
            dims_sem = (("parallel", "arbitrary") if B // Bt >= 2
                        else ("parallel", "parallel"))
            out = pl.pallas_call(
                kernel,
                out_shape=jax.ShapeDtypeStruct(out_shape_r, x.dtype),
                grid=grid,
                in_specs=[in_spec],
                out_specs=out_spec,
                compiler_params=pltpu.CompilerParams(
                    dimension_semantics=dims_sem,
                    vmem_limit_bytes=vmem_limit),
                cost_estimate=_cost_estimate(ideal_bytes),
            )(xr)
        else:
            # C not 128-aligned: build the whole (..., m*C) tile in registers
            # and issue ONE full-width store (unmasked whenever m*C % 128 == 0).
            Bt = _pick_bt(B, fitting, 1)
            grid = (B // Bt,)
            in_spec = pl.BlockSpec((Bt,) + obj + (C,),
                                   lambda b: (b,) + zeros_obj + (0,))
            out_spec = pl.BlockSpec((Bt,) + obj + (m * C,),
                                    lambda b: (b,) + zeros_obj + (0,))

            def kernel(x_ref, o_ref):
                slabs = []
                for p in perms:
                    if p == identity:
                        slabs.append(x_ref[...])
                    else:
                        slabs.append(jnp.transpose(x_ref[...], p))
                o_ref[...] = jnp.concatenate(slabs, axis=-1)

            out = pl.pallas_call(
                kernel,
                out_shape=jax.ShapeDtypeStruct(out_shape_r, x.dtype),
                grid=grid,
                in_specs=[in_spec],
                out_specs=out_spec,
                compiler_params=pltpu.CompilerParams(
                    dimension_semantics=("parallel",),
                    vmem_limit_bytes=vmem_limit),
                cost_estimate=_cost_estimate(ideal_bytes),
            )(xr)
    else:
        # ---------------- object-tiled path ----------------
        # Even a Bt=1 full-extent block exceeds the budget (dim=3 / large N,
        # esp. on v7x's 64 MiB VMEM).  Tile every object axis with the same
        # tile T (so the tile-local transpose is shape-preserving and the
        # sublane dim stays legal: T % 8 == 0 or T == N).  The input is passed
        # m times with statically permuted index_maps, so the pipeline DMA
        # fetches exactly the permuted tile for each slab.
        def tiled_step_bytes(t):
            # double-buffered: m input tiles + one (m*C)-wide output tile
            return 4 * m * (t ** d) * C * itemsize

        cands = sorted(set(list(range(8, N, 8)) + [N]))
        fits_t = [t for t in cands if tiled_step_bytes(t) <= budget]
        if fits_t:
            div_fits = [t for t in fits_t if N % t == 0]
            T = max(div_fits) if div_fits else max(fits_t)
        else:
            T = min(cands)
            if tiled_step_bytes(T) > vmem_limit:
                raise ValueError(
                    "Permutation: even the minimum object tile does not fit "
                    f"VMEM (need {tiled_step_bytes(T)} bytes, limit "
                    f"{vmem_limit}); shape {x.shape} with dim={dim} is "
                    "unsupported on this device.")

        Tg = pl.cdiv(N, T)
        grid = (B,) + (Tg,) * d
        block_in = (1,) + (T,) * d + (C,)
        block_out = (1,) + (T,) * d + (m * C,)

        def make_in_map(p):
            # Input object axis r takes its block index from output object
            # axis p^{-1}(r); grid args are (b, i_1, ..., i_d).
            inv = tuple(p.index(r) for r in range(1, d + 1))

            def idx_map(*g):
                return (g[0],) + tuple(g[a] for a in inv) + (0,)

            return idx_map

        in_specs = [pl.BlockSpec(block_in, make_in_map(p)) for p in perms]
        out_spec = pl.BlockSpec(block_out, lambda *g: tuple(g) + (0,))

        def kernel(*refs):
            x_refs = refs[:m]
            o_ref = refs[m]
            if lane_dense:
                # j*C offsets are 128-aligned -> unmasked per-slab stores.
                for j, p in enumerate(perms):
                    if p == identity:
                        o_ref[..., j * C:(j + 1) * C] = x_refs[j][...]
                    else:
                        o_ref[..., j * C:(j + 1) * C] = jnp.transpose(
                            x_refs[j][...], p)
            else:
                slabs = []
                for j, p in enumerate(perms):
                    v = x_refs[j][...]
                    slabs.append(v if p == identity else jnp.transpose(v, p))
                o_ref[...] = jnp.concatenate(slabs, axis=-1)

        out = pl.pallas_call(
            kernel,
            out_shape=jax.ShapeDtypeStruct(out_shape_r, x.dtype),
            grid=grid,
            in_specs=in_specs,
            out_specs=out_spec,
            compiler_params=pltpu.CompilerParams(
                dimension_semantics=("parallel",) * (1 + d),
                vmem_limit_bytes=vmem_limit),
            cost_estimate=_cost_estimate(2 * m * xr.size * itemsize),
        )(*([xr] * m))

    return out.reshape(x.shape[:-1] + (m * C,))


def permutation_reference(x, dim: int):
    """Pure-JAX reference mirroring the PyTorch forward."""
    if dim <= 1:
        return x
    nr_dims = x.ndim
    index = tuple(range(nr_dims - 1))
    start_dim = nr_dims - 1 - dim
    assert start_dim > 0
    res = []
    for i in itertools.permutations(index[start_dim:]):
        p = index[:start_dim] + i + (nr_dims - 1,)
        res.append(jnp.transpose(x, p))
    return jnp.concatenate(res, axis=-1)


if __name__ == "__main__":
    dim = 2  # common NLM case; m = dim! = 2
    key = jax.random.PRNGKey(0)
    k1, k2, k3 = jax.random.split(key, 3)

    # Case 1: 128-aligned channels -> lane-dense per-permutation grid axis.
    B, N, C = 2, 8, 128
    x1 = jax.random.normal(k1, (B, N, N, C), dtype=jnp.float32)
    out1 = jax.block_until_ready(permutation_forward(x1, dim))
    ref1 = permutation_reference(x1, dim)
    assert out1.shape == (B, N, N, 2 * C), out1.shape
    assert jnp.array_equal(out1, ref1), "mismatch vs reference (C=128 path)"

    # Case 2: non-128-multiple channels -> single full-width store fallback.
    Cu = 64
    x2 = jax.random.normal(k2, (B, N, N, Cu), dtype=jnp.float32)
    out2 = jax.block_until_ready(permutation_forward(x2, dim))
    ref2 = permutation_reference(x2, dim)
    assert out2.shape == (B, N, N, 2 * Cu), out2.shape
    assert jnp.array_equal(out2, ref2), "mismatch vs reference (C=64 path)"

    # Case 3: force the object-tiled path (stands in for dim=3 / large N whose
    # full-extent block would not fit VMEM, e.g. on v7x's 64 MiB per-TC VMEM).
    N3 = 16
    x3 = jax.random.normal(k3, (B, N3, N3, C), dtype=jnp.float32)
    out3 = jax.block_until_ready(
        permutation_forward(x3, dim, _vmem_budget_override=256 * 1024))
    ref3 = permutation_reference(x3, dim)
    assert out3.shape == (B, N3, N3, 2 * C), out3.shape
    assert jnp.array_equal(out3, ref3), "mismatch vs reference (tiled path)"

    # Case 4: dim <= 1 is the identity (no kernel launched).
    assert jnp.array_equal(permutation_forward(x1, 1), x1)

    print("KERNEL_OK")
</pallas_src>

<mosaic_0001>
module attributes {stable_mosaic.version = 11 : i64} {
  func.func @kernel(%arg0: i32, %arg1: i32, %arg2: memref<1x8x8x128xf32, #tpu.memory_space<vmem>>, %arg3: memref<1x8x8x128xf32, #tpu.memory_space<vmem>>) attributes {dimension_semantics = [#tpu.dimension_semantics<parallel>, #tpu.dimension_semantics<arbitrary>], iteration_bounds = array<i64: 2, 2>, scalar_prefetch = 0 : i64, scratch_operands = 0 : i64, tpu.core_type = #tpu.core_type<tc>, window_params = [{transform_indices = @transform_0, window_bounds = array<i64: 1, 8, 8, 128>}, {transform_indices = @transform_1, window_bounds = array<i64: 1, 8, 8, 128>}]} {
    %c0_i32 = arith.constant 0 : i32
    %0 = arith.cmpi eq, %arg1, %c0_i32 : i32
    %1 = arith.extui %0 : i1 to i32
    %c0_i32_0 = arith.constant 0 : i32
    %2 = arith.cmpi ne, %1, %c0_i32_0 : i32
    scf.if %2 {
      %c0 = arith.constant 0 : index
      %c0_2 = arith.constant 0 : index
      %c0_3 = arith.constant 0 : index
      %c0_4 = arith.constant 0 : index
      %6 = vector.load %arg2[%c0, %c0_2, %c0_3, %c0_4] : memref<1x8x8x128xf32, #tpu.memory_space<vmem>>, vector<1x8x8x128xf32>
      %c0_5 = arith.constant 0 : index
      %c0_6 = arith.constant 0 : index
      %c0_7 = arith.constant 0 : index
      %c0_8 = arith.constant 0 : index
      %7 = vector.load %arg3[%c0_5, %c0_6, %c0_7, %c0_8] : memref<1x8x8x128xf32, #tpu.memory_space<vmem>>, vector<1x8x8x128xf32>
      tpu.vector_store %arg3[%c0_5, %c0_6, %c0_7, %c0_8], %6 {strides = array<i32>} : memref<1x8x8x128xf32, #tpu.memory_space<vmem>>, vector<1x8x8x128xf32>,
    } else {
    }
    %c1_i32 = arith.constant 1 : i32
    %3 = arith.cmpi eq, %arg1, %c1_i32 : i32
    %4 = arith.extui %3 : i1 to i32
    %c0_i32_1 = arith.constant 0 : i32
    %5 = arith.cmpi ne, %4, %c0_i32_1 : i32
    scf.if %5 {
      %c0 = arith.constant 0 : index
      %c0_2 = arith.constant 0 : index
      %c0_3 = arith.constant 0 : index
      %c0_4 = arith.constant 0 : index
      %6 = vector.load %arg2[%c0, %c0_2, %c0_3, %c0_4] : memref<1x8x8x128xf32, #tpu.memory_space<vmem>>, vector<1x8x8x128xf32>
      %7 = tpu.transpose %6, [0, 2, 1, 3] : vector<1x8x8x128xf32> -> vector<1x8x8x128xf32>
      %c0_5 = arith.constant 0 : index
      %c0_6 = arith.constant 0 : index
      %c0_7 = arith.constant 0 : index
      %c0_8 = arith.constant 0 : index
      %8 = vector.load %arg3[%c0_5, %c0_6, %c0_7, %c0_8] : memref<1x8x8x128xf32, #tpu.memory_space<vmem>>, vector<1x8x8x128xf32>
      tpu.vector_store %arg3[%c0_5, %c0_6, %c0_7, %c0_8], %7 {strides = array<i32>} : memref<1x8x8x128xf32, #tpu.memory_space<vmem>>, vector<1x8x8x128xf32>,
    } else {
    }
    return
  }
  func.func @transform_0(%arg0: i32, %arg1: i32) -> (i32, i32, i32, i32) {
    %c0_i32 = arith.constant 0 : i32
    %c0_i32_0 = arith.constant 0 : i32
    %c0_i32_1 = arith.constant 0 : i32
    %c0_i32_2 = arith.constant 0 : i32
    return %arg0, %c0_i32, %c0_i32_0, %c0_i32_1 : i32, i32, i32, i32
  }
  func.func @transform_1(%arg0: i32, %arg1: i32) -> (i32, i32, i32, i32) {
    %c0_i32 = arith.constant 0 : i32
    %c0_i32_0 = arith.constant 0 : i32
    %c0_i32_1 = arith.constant 0 : i32
    return %arg0, %c0_i32, %c0_i32_0, %arg1 : i32, i32, i32, i32
  }
}

</mosaic_0001>

<llo_original>
// kernel: tpu_custom_call.1
$region0: #{tpu_custom_call.1}
  #allocation0 [shape = 'u32[]', space=smem, size = 0x4, offset = 0x4, fixed_abs, tag = 'smem constant byte address 0x4 - core index']
  #allocation1 [shape = 'u32[144,128]{1,0:T(1,128)}', space=vmem, size = 0x12000, scoped, tag = 'internal scratch']
  %s0 = inlined_call_operand.hbm [shape: f32[2,8,8,128], index: 0, kind: input, shape index: {}]
  %s1 = inlined_call_operand.hbm [shape: f32[2,8,8,256], index: 1, kind: output, shape index: {}]
  %s2 = sld [smem:[#allocation0]]
  $region49: #{tpu_custom_call.1} parent=0
    _
  %s4 = ssub.s32 1, %s2
  %s5 = scalar_select 0, %s4, %s2
  $region1: #{tpu_custom_call.1} parent=0
    #allocation2 [shape = 'u8[65536]{0}', space=vmem, size = 0x10000, scoped, tag = 'input window, operand 0']
    #allocation3 [shape = 's32[2]{0}', space=sflag, size = 0x8, scoped, tag = 'scoped memory for tpu_custom_call.1']
    #allocation4 [shape = 's32[2]{0}', space=sflag, size = 0x8, scoped, tag = 'scoped memory for tpu_custom_call.1']
    #allocation5 [shape = 'u8[65536]{0}', space=vmem, size = 0x10000, scoped, tag = 'output window, operand 0']
    %6 = vsyncpa [#allocation3], 0
    %s7 = scalar_lea.sflag [#allocation3], 1
    %8 = vsyncpa %s7, 0
    %9 = vsyncpa [#allocation4], 0
    %s10 = scalar_lea.sflag [#allocation4], 1
    %11 = vsyncpa %s10, 0
    loop: start=0, step=1, limit=6
    $region2: #{tpu_custom_call.1} parent=1 // loop_pre_header
      _
    $region3: #{tpu_custom_call.1} parent=1 // loop_header
      %s13 = sphi 0, %s17
      %p14 = scmp.ge.s32.totalorder %s13, 6
      %s20 = sphi 0, %s32
      %s21 = sphi 0, %s28
      %s22 = sphi 0, %s20
      %s23 = sphi 0, %s21
      %s24 = sphi 0, %s22
      %s25 = sphi 0, %s23
      %s35 = sphi 0, %s37
      %s38 = sphi 0, %s35
      %s39 = sphi 0, %s38
      %s55 = sphi 0, %s39
      %s63 = sphi 0, %s65
      %s66 = sphi 0, %s63
      %s67 = sphi 0, %s66
      %s83 = sphi 0, %s67
    $region4: #{tpu_custom_call.1} parent=1 // loop_header_branch
      %16 = sbr.rel (%p14) target = $region8
    $region5: #{tpu_custom_call.1} parent=1 // loop_body
      %s18 = ssub.s32 %s13, 1
      %s19 = ssub.s32 %s13, 2
      %s26 = sadd.s32 1, %s21
      %p27 = scmp.ge.s32.totalorder %s26, 2
      %s28 = scalar_select %p27, 0, %s26
      %s29 = sadd.s32 1, %s20
      %s30 = scalar_select %p27, %s29, %s20
      %p31 = scmp.ge.s32.totalorder %s30, 2
      %s32 = scalar_select %p31, 0, %s30
      %s33 = ssub.s32 %s20, %s32
      %p34 = scmp.eq.s32.totalorder %s33, 0
      %s36 = sadd.s32 %s35, 1
      %s37 = scalar_select %p34, %s35, %s36
      %p40 = pneg %p34
      %p41 = scmp.eq.s32.totalorder %s13, 3
      %p42 = por %p40, %p41
      %p43 = scmp.ne.s32.totalorder %s35, %s38
      %p44 = scmp.eq.s32.totalorder %s13, 0
      %p45 = por %p43, %p44
      %p46 = scmp.ne.s32.totalorder %s35, %s38
      %p47 = scmp.eq.s32.totalorder %s18, 3
      %p48 = por %p46, %p47
      %p49 = scmp.ne.s32.totalorder %s38, %s39
      %p50 = scmp.eq.s32.totalorder %s18, 0
      %p51 = por %p49, %p50
      %p52 = scmp.ne.s32.totalorder %s38, %s39
      %p53 = scmp.eq.s32.totalorder %s19, 3
      %p54 = por %p52, %p53
      %p56 = scmp.ne.s32.totalorder %s39, %s55
      %p57 = scmp.eq.s32.totalorder %s19, 0
      %p58 = por %p56, %p57
      %s59 = ssub.s32 %s20, %s32
      %s60 = ssub.s32 %s21, %s28
      %s61 = sor.u32 %s59, %s60
      %p62 = scmp.eq.s32.totalorder %s61, 0
      %s64 = sadd.s32 %s63, 1
      %s65 = scalar_select %p62, %s63, %s64
      %p68 = pneg %p62
      %p69 = scmp.eq.s32.totalorder %s13, 3
      %p70 = por %p68, %p69
      %p71 = scmp.ne.s32.totalorder %s63, %s66
      %p72 = scmp.eq.s32.totalorder %s13, 0
      %p73 = por %p71, %p72
      %p74 = scmp.ne.s32.totalorder %s63, %s66
      %p75 = scmp.eq.s32.totalorder %s18, 3
      %p76 = por %p74, %p75
      %p77 = scmp.ne.s32.totalorder %s66, %s67
      %p78 = scmp.eq.s32.totalorder %s18, 0
      %p79 = por %p77, %p78
      %p80 = scmp.ne.s32.totalorder %s66, %s67
      %p81 = scmp.eq.s32.totalorder %s19, 3
      %p82 = por %p80, %p81
      %p84 = scmp.ne.s32.totalorder %s67, %s83
      %p85 = scmp.eq.s32.totalorder %s19, 0
      %p86 = por %p84, %p85
      %p87 = scmp.le.s32.totalorder 1, %s13
      %p88 = scmp.lt.s32.totalorder %s13, 5
      %p89 = pnand %p87, %p88
      %p90 = pneg %p89
      // Predicated region
      $region9: #{tpu_custom_call.1} parent=5 // pred_check
        _
      $region10: #{tpu_custom_call.1} parent=5 // pred_check_branch
        %92 = sbr.rel (%p89) target = $region12
      $region11: #{tpu_custom_call.1} parent=5 // pred_region
        %s93 = ssub.s32 %s13, 1
      $region12: #{tpu_custom_call.1} parent=5 // pred_fallthru
        _
      %p94 = scmp.lt.s32.totalorder %s13, 4
      // Predicated region
      $region13: #{tpu_custom_call.1} parent=5 // pred_check
        %p95 = pneg %p94
      $region14: #{tpu_custom_call.1} parent=5 // pred_check_branch
        %97 = sbr.rel (%p95) target = $region16
      $region15: #{tpu_custom_call.1} parent=5 // pred_region
        // Predicated region
        $region17: #{tpu_custom_call.1} parent=15 // pred_check
          %p98 = pneg %p45
        $region18: #{tpu_custom_call.1} parent=15 // pred_check_branch
          %100 = sbr.rel (%p98) target = $region20
        $region19: #{tpu_custom_call.1} parent=15 // pred_region
          %s101 = sand.u32 %s35, 1
          %s102 = scalar_lea.sflag [#allocation3], %s101
          %s103 = sand.u32 %s35, 1
          %s104 = smul.addr %s103, 64
          %s105 = scalar_lea.vmem [#allocation2], %s104
          %s107 = ssub.s32 1024, 1024
          %108 = vsyncadd %s102, %s107
          %s109 = smul.addr %s20, 8
          %s110 = smul.addr %s109, 128
          %s111 = scalar_lea.hbm %s0, %s110
          %s112 = sshll.u32 %s105, 4
          %s113 = int_to_ptr.vmem [resolvable:$true] %s112
          %118 = dma.hbm_to_vmem [thread:$0]  %s111, 1024, %s113, %s102, 128, 128, 8
        $region20: #{tpu_custom_call.1} parent=15 // pred_fallthru
          _
      $region16: #{tpu_custom_call.1} parent=5 // pred_fallthru
        _
      %p119 = scmp.le.s32.totalorder 1, %s13
      %p120 = scmp.lt.s32.totalorder %s13, 5
      %p121 = pnand %p119, %p120
      %p122 = pneg %p121
      // Predicated region
      $region21: #{tpu_custom_call.1} parent=5 // pred_check
        _
      $region22: #{tpu_custom_call.1} parent=5 // pred_check_branch
        %124 = sbr.rel (%p121) target = $region24
      $region23: #{tpu_custom_call.1} parent=5 // pred_region
        %s125 = ssub.s32 %s13, 1
        %s126 = sand.u32 %s38, 1
        %s127 = scalar_lea.sflag [#allocation3], %s126
        %s128 = sand.u32 %s38, 1
        %s129 = smul.addr %s128, 64
        %s130 = scalar_lea.vmem [#allocation2], %s129
        // Predicated region
        $region25: #{tpu_custom_call.1} parent=23 // pred_check
          %p131 = pneg %p51
        $region26: #{tpu_custom_call.1} parent=23 // pred_check_branch
          %133 = sbr.rel (%p131) target = $region28
        $region27: #{tpu_custom_call.1} parent=23 // pred_region
          %134 = dma.done %s127, 1024
        $region28: #{tpu_custom_call.1} parent=23 // pred_fallthru
          _
        %s135 = sand.u32 %s38, 1
        %s136 = scalar_lea.sflag [#allocation3], %s135
        %s137 = sand.u32 %s38, 1
        %s138 = smul.addr %s137, 64
        %s139 = scalar_lea.vmem [#allocation2], %s138
        %p140 = pneg %p51
        %p141 = pneg %p48
        %p142 = pneg %p79
        %p143 = pneg %p76
        %s144 = sand.u32 %s66, 1
        %s145 = scalar_lea.sflag [#allocation4], %s144
        %s146 = sand.u32 %s66, 1
        %s147 = smul.addr %s146, 64
        %s148 = scalar_lea.vmem [#allocation5], %s147
        %p149 = scmp.eq.s32.totalorder %s23, 0
        // Predicated region
        $region29: #{tpu_custom_call.1} parent=23 // pred_check
          %p150 = pneg %p149
        $region30: #{tpu_custom_call.1} parent=23 // pred_check_branch
          %152 = sbr.rel (%p150) target = $region32
        $region31: #{tpu_custom_call.1} parent=23 // pred_region
          %v153 = vld [vmem:[%s130] sm:$0xff]
          %v154 = vld [vmem:[%s130 + $0x8] sm:$0xff]
          %v155 = vld [vmem:[%s130 + $0x10] sm:$0xff]
          %v156 = vld [vmem:[%s130 + $0x18] sm:$0xff]
          %v157 = vld [vmem:[%s130 + $0x20] sm:$0xff]
          %v158 = vld [vmem:[%s130 + $0x28] sm:$0xff]
          %v159 = vld [vmem:[%s130 + $0x30] sm:$0xff]
          %v160 = vld [vmem:[%s130 + $0x38] sm:$0xff]
          %161 = vst [vmem:[%s148] sm:$0xff] %v153
          %162 = vst [vmem:[%s148 + $0x8] sm:$0xff] %v154
          %163 = vst [vmem:[%s148 + $0x10] sm:$0xff] %v155
          %164 = vst [vmem:[%s148 + $0x18] sm:$0xff] %v156
          %165 = vst [vmem:[%s148 + $0x20] sm:$0xff] %v157
          %166 = vst [vmem:[%s148 + $0x28] sm:$0xff] %v158
          %167 = vst [vmem:[%s148 + $0x30] sm:$0xff] %v159
          %168 = vst [vmem:[%s148 + $0x38] sm:$0xff] %v160
        $region32: #{tpu_custom_call.1} parent=23 // pred_fallthru
          _
        %p169 = scmp.eq.s32.totalorder %s23, 1
        // Predicated region
        $region33: #{tpu_custom_call.1} parent=23 // pred_check
          %p170 = pneg %p169
        $region34: #{tpu_custom_call.1} parent=23 // pred_check_branch
          %172 = sbr.rel (%p170) target = $region36
        $region35: #{tpu_custom_call.1} parent=23 // pred_region
          %v173 = vld [vmem:[%s130] sm:$0xff]
          %v174 = vld [vmem:[%s130 + $0x8] sm:$0xff]
          %v175 = vld [vmem:[%s130 + $0x10] sm:$0xff]
          %v176 = vld [vmem:[%s130 + $0x18] sm:$0xff]
          %v177 = vld [vmem:[%s130 + $0x20] sm:$0xff]
          %v178 = vld [vmem:[%s130 + $0x28] sm:$0xff]
          %v179 = vld [vmem:[%s130 + $0x30] sm:$0xff]
          %v180 = vld [vmem:[%s130 + $0x38] sm:$0xff]
          %v181 = vcombine.low %v173, %v175
          %v182 = vcombine.high %v173, %v175
          %v184 = vunpack.c.l.s4 1983009808
          %v185 = vunpack.c.0.s8 %v184
          %v186 = vlaneseq
          %v187 = vshrl.u32 %v186, 7
          %v188 = vsub.s32 %v185, %v187
          %v189 = vrot.slane %v181, %v188
          %v191 = vunpack.c.l.s4 1983009808
          %v192 = vunpack.c.0.s8 %v191
          %v193 = vlaneseq
          %v194 = vshrl.u32 %v193, 7
          %v195 = vsub.s32 %v192, %v194
          %v196 = vrot.slane %v182, %v195
          %v197 = vcombine.low %v174, %v176
          %v198 = vcombine.high %v174, %v176
          %v200 = vunpack.c.l.s4 1983009808
          %v201 = vunpack.c.0.s8 %v200
          %v202 = vlaneseq
          %v203 = vshrl.u32 %v202, 7
          %v204 = vsub.s32 %v201, %v203
          %v205 = vrot.slane %v197, %v204
          %v207 = vunpack.c.l.s4 1983009808
          %v208 = vunpack.c.0.s8 %v207
          %v209 = vlaneseq
          %v210 = vshrl.u32 %v209, 7
          %v211 = vsub.s32 %v208, %v210
          %v212 = vrot.slane %v198, %v211
          %v213 = vcombine.low %v177, %v179
          %v214 = vcombine.high %v177, %v179
          %v216 = vunpack.c.l.s4 1983009808
          %v217 = vunpack.c.0.s8 %v216
          %v218 = vlaneseq
          %v219 = vshrl.u32 %v218, 7
          %v220 = vsub.s32 %v217, %v219
          %v221 = vrot.slane %v213, %v220
          %v223 = vunpack.c.l.s4 1983009808
          %v224 = vunpack.c.0.s8 %v223
          %v225 = vlaneseq
          %v226 = vshrl.u32 %v225, 7
          %v227 = vsub.s32 %v224, %v226
          %v228 = vrot.slane %v214, %v227
          %v229 = vcombine.low %v178, %v180
          %v230 = vcombine.high %v178, %v180
          %v232 = vunpack.c.l.s4 1983009808
          %v233 = vunpack.c.0.s8 %v232
          %v234 = vlaneseq
          %v235 = vshrl.u32 %v234, 7
          %v236 = vsub.s32 %v233, %v235
          %v237 = vrot.slane %v229, %v236
          %v239 = vunpack.c.l.s4 1983009808
          %v240 = vunpack.c.0.s8 %v239
          %v241 = vlaneseq
          %v242 = vshrl.u32 %v241, 7
          %v243 = vsub.s32 %v240, %v242
          %v244 = vrot.slane %v230, %v243
          %v245 = vcombine.low %v189, %v205
          %v246 = vcombine.high %v189, %v205
          %v248 = vunpack.c.l.s4 1934713408
          %v249 = vunpack.c.0.s8 %v248
          %v250 = vlaneseq
          %v251 = vshrl.u32 %v250, 7
          %v252 = vsub.s32 %v249, %v251
          %v253 = vrot.slane %v245, %v252
          %v255 = vunpack.c.l.s4 1934713408
          %v256 = vunpack.c.0.s8 %v255
          %v257 = vlaneseq
          %v258 = vshrl.u32 %v257, 7
          %v259 = vsub.s32 %v256, %v258
          %v260 = vrot.slane %v246, %v259
          %v261 = vcombine.low %v196, %v212
          %v262 = vcombine.high %v196, %v212
          %v264 = vunpack.c.l.s4 1934713408
          %v265 = vunpack.c.0.s8 %v264
          %v266 = vlaneseq
          %v267 = vshrl.u32 %v266, 7
          %v268 = vsub.s32 %v265, %v267
          %v269 = vrot.slane %v261, %v268
          %v271 = vunpack.c.l.s4 1934713408
          %v272 = vunpack.c.0.s8 %v271
          %v273 = vlaneseq
          %v274 = vshrl.u32 %v273, 7
          %v275 = vsub.s32 %v272, %v274
          %v276 = vrot.slane %v262, %v275
          %v277 = vcombine.low %v221, %v237
          %v278 = vcombine.high %v221, %v237
          %v280 = vunpack.c.l.s4 1934713408
          %v281 = vunpack.c.0.s8 %v280
          %v282 = vlaneseq
          %v283 = vshrl.u32 %v282, 7
          %v284 = vsub.s32 %v281, %v283
          %v285 = vrot.slane %v277, %v284
          %v287 = vunpack.c.l.s4 1934713408
          %v288 = vunpack.c.0.s8 %v287
          %v289 = vlaneseq
          %v290 = vshrl.u32 %v289, 7
          %v291 = vsub.s32 %v288, %v290
          %v292 = vrot.slane %v278, %v291
          %v293 = vcombine.low %v228, %v244
          %v294 = vcombine.high %v228, %v244
          %v296 = vunpack.c.l.s4 1934713408
          %v297 = vunpack.c.0.s8 %v296
          %v298 = vlaneseq
          %v299 = vshrl.u32 %v298, 7
          %v300 = vsub.s32 %v297, %v299
          %v301 = vrot.slane %v293, %v300
          %v303 = vunpack.c.l.s4 1934713408
          %v304 = vunpack.c.0.s8 %v303
          %v305 = vlaneseq
          %v306 = vshrl.u32 %v305, 7
          %v307 = vsub.s32 %v304, %v306
          %v308 = vrot.slane %v294, %v307
          %v309 = vcombine.low %v253, %v285
          %v310 = vcombine.high %v253, %v285
          %v311 = vcombine.low %v260, %v292
          %v312 = vcombine.high %v260, %v292
          %v313 = vcombine.low %v269, %v301
          %v314 = vcombine.high %v269, %v301
          %v315 = vcombine.low %v276, %v308
          %v316 = vcombine.high %v276, %v308
          %317 = vst [vmem:[%s148] sm:$0xff] %v309
          %318 = vst [vmem:[%s148 + $0x8] sm:$0xff] %v310
          %319 = vst [vmem:[%s148 + $0x10] sm:$0xff] %v311
          %320 = vst [vmem:[%s148 + $0x18] sm:$0xff] %v312
          %321 = vst [vmem:[%s148 + $0x20] sm:$0xff] %v313
          %322 = vst [vmem:[%s148 + $0x28] sm:$0xff] %v314
          %323 = vst [vmem:[%s148 + $0x30] sm:$0xff] %v315
          %324 = vst [vmem:[%s148 + $0x38] sm:$0xff] %v316
        $region36: #{tpu_custom_call.1} parent=23 // pred_fallthru
          _
        %s325 = sand.u32 %s66, 1
        %s326 = scalar_lea.sflag [#allocation4], %s325
        %s327 = sand.u32 %s66, 1
        %s328 = smul.addr %s327, 64
        %s329 = scalar_lea.vmem [#allocation5], %s328
        // Predicated region
        $region37: #{tpu_custom_call.1} parent=23 // pred_check
          %p330 = pneg %p76
        $region38: #{tpu_custom_call.1} parent=23 // pred_check_branch
          %332 = sbr.rel (%p330) target = $region40
        $region39: #{tpu_custom_call.1} parent=23 // pred_region
          %s334 = ssub.s32 1024, 1024
          %335 = vsyncadd %s326, %s334
          %s336 = smul.addr %s22, 16
          %s337 = sadd.s32 %s23, %s336
          %s338 = smul.addr %s337, 128
          %s339 = scalar_lea.hbm %s1, %s338
          %s340 = sshll.u32 %s329, 4
          %s341 = int_to_ptr.vmem [resolvable:$true] %s340
          %346 = dma.vmem_to_hbm [thread:$0]  %s341, 1024, %s339, %s326, 128, 256, 8
        $region40: #{tpu_custom_call.1} parent=23 // pred_fallthru
          _
      $region24: #{tpu_custom_call.1} parent=5 // pred_fallthru
        _
      %p347 = scmp.le.s32.totalorder 2, %s13
      // Predicated region
      $region41: #{tpu_custom_call.1} parent=5 // pred_check
        %p348 = pneg %p347
      $region42: #{tpu_custom_call.1} parent=5 // pred_check_branch
        %350 = sbr.rel (%p348) target = $region44
      $region43: #{tpu_custom_call.1} parent=5 // pred_region
        %s351 = ssub.s32 %s13, 2
        // Predicated region
        $region45: #{tpu_custom_call.1} parent=43 // pred_check
          %p352 = pneg %p82
        $region46: #{tpu_custom_call.1} parent=43 // pred_check_branch
          %354 = sbr.rel (%p352) target = $region48
        $region47: #{tpu_custom_call.1} parent=43 // pred_region
          %s355 = sand.u32 %s67, 1
          %s356 = scalar_lea.sflag [#allocation4], %s355
          %s357 = sand.u32 %s67, 1
          %s358 = smul.addr %s357, 64
          %s359 = scalar_lea.vmem [#allocation5], %s358
          %360 = dma.done %s356, 1024
        $region48: #{tpu_custom_call.1} parent=43 // pred_fallthru
          _
      $region44: #{tpu_custom_call.1} parent=5 // pred_fallthru
        _
    $region6: #{tpu_custom_call.1} parent=1 // loop_footer
      %s17 = sadd.s32 1, %s13
    $region7: #{tpu_custom_call.1} parent=1 // loop_footer_branch
      %12 = sbr.rel target = $region3
    $region8: #{tpu_custom_call.1} parent=1 // loop_exit
      _
    %361 = vsyncpa [#allocation3], 1
    %s362 = scalar_lea.sflag [#allocation3], 1
    %363 = vsyncpa %s362, 1
    %364 = vsyncpa [#allocation4], 1
    %s365 = scalar_lea.sflag [#allocation4], 1
    %366 = vsyncpa %s365, 1

</llo_original>
